<compile_context>
chip_gen: v7x
topology: tpu7x:2x2x1
jax: 0.10.0
libtpu: 0.0.40
codegen_flags: <defaults>
</compile_context>

<pallas_src>
import functools

import jax
import jax.numpy as jnp
from jax.experimental import pallas as pl
from jax.experimental.pallas import tpu as pltpu

_MIB = 1024 * 1024


def _round_up(x, m):
    return (x + m - 1) // m * m


@functools.lru_cache(maxsize=1)
def _tpu_hw():
    """Return (vmem_limit_bytes, two_tensorcores) — generation aware, safe fallbacks."""
    kind = ""
    try:
        kind = jax.devices()[0].device_kind.lower()
    except Exception:
        pass
    two_cores = "v7" in kind

    vmem_bytes = 0
    try:
        info = pltpu.get_tpu_info()
        for attr in ("vmem_capacity_bytes", "vmem_size_bytes", "vmem_bytes"):
            v = getattr(info, attr, None)
            if v:
                vmem_bytes = int(v)
                break
    except Exception:
        vmem_bytes = 0
    if vmem_bytes <= 0:
        # Fallback: v5e/v6e have 128 MiB VMEM per TC; be conservative otherwise.
        vmem_bytes = 128 * _MIB if ("v5" in kind or "v6" in kind) else 64 * _MIB
    if two_cores:  # v7x: 64 MiB per TensorCore
        vmem_bytes = min(vmem_bytes, 64 * _MIB)

    # Leave headroom for Mosaic internal scratch, output double buffers, etc.
    # 128 MiB -> 96 MiB limit; 64 MiB -> 44 MiB limit.
    vmem_limit = max(32 * _MIB, min(vmem_bytes - 20 * _MIB, (3 * vmem_bytes) // 4))
    return int(vmem_limit), bool(two_cores)


def _block_spec(shape, index_map, buffers=None):
    """BlockSpec with an optional pipeline buffer-count override (safe fallback)."""
    if buffers is not None:
        try:
            return pl.BlockSpec(shape, index_map, pipeline_mode=pl.Buffered(buffers))
        except Exception:
            pass
    return pl.BlockSpec(shape, index_map)


def _choose_tiles(n, dm_pad, d_sae, x_item, w_item, out_item, use_scratch,
                  vmem_limit, two_cores, block_n, block_k):
    """Pick (tm, tk) from the VMEM budget; tm as large as N / megacore allow."""
    sae_full = _round_up(d_sae, 128)

    # ---- token tile tm ------------------------------------------------------
    tm_cap = _round_up(n, 8)
    if two_cores and n > 8:
        # Keep >= 2 token tiles so the "parallel" axis can be megacore-sharded.
        tm_cap = min(tm_cap, _round_up((n + 1) // 2, 8))
    tm_target = 512 if two_cores else 1024
    if block_n is not None:
        tm_target = max(8, _round_up(int(block_n), 8))

    candidates = []
    for c in (min(tm_target, tm_cap), 512, 256, 128, 64, 32, 16, 8):
        c = min(c, tm_cap)
        if c not in candidates:
            candidates.append(c)

    # ---- d_sae tile tk from the VMEM budget ---------------------------------
    if block_k is not None:
        tk_cap = min(sae_full, max(128, _round_up(int(block_k), 128)))
    else:
        tk_cap = min(sae_full, 2048)
    min_tk = min(512, tk_cap)

    def tk_for(tm):
        # Fixed (tk-independent) footprint: x tile (counted double-buffered,
        # conservative), output tile (2 buffers), optional f32 scratch, b_dec.
        fixed = (2 * tm * dm_pad * x_item
                 + 2 * tm * dm_pad * out_item
                 + (tm * dm_pad * 4 if use_scratch else 0)
                 + dm_pad * 4)
        # Per d_sae column: W_enc + W_dec double buffers, b_enc/threshold
        # double buffers, and the materialized pre (f32) / acts intermediates.
        per_tk = 4 * dm_pad * w_item + 16 + tm * (4 + w_item)
        budget = vmem_limit - fixed - 4 * _MIB   # slack for Mosaic internals
        if budget <= 0:
            return 0
        return int(budget // per_tk) // 128 * 128

    for tm in candidates:
        tk = min(tk_for(tm), tk_cap)
        if tk >= min_tk:
            return tm, tk
    tm = candidates[-1]
    tk = max(128, min(tk_for(tm), tk_cap))
    return tm, tk


def _sae_kernel_accumulate_out(x_ref, w_enc_ref, b_enc_ref, thr_ref,
                               w_dec_ref, b_dec_ref, o_ref):
    """f32-output path: the revisited output block is the f32 accumulator."""
    k = pl.program_id(1)

    @pl.when(k == 0)
    def _():
        o_ref[...] = jnp.zeros_like(o_ref)

    # encode this d_sae tile (MXU operands already in the weight dtype)
    pre = jnp.dot(x_ref[...], w_enc_ref[...], preferred_element_type=jnp.float32)
    pre = pre + b_enc_ref[...].astype(jnp.float32)

    # JumpReLU gate in f32 (threshold may be negative -> keep relu explicitly)
    acts = jnp.where(pre > thr_ref[...].astype(jnp.float32),
                     jnp.maximum(pre, 0.0), 0.0)

    # decode partial sum into the resident output block
    o_ref[...] += jnp.dot(acts.astype(w_dec_ref.dtype), w_dec_ref[...],
                          preferred_element_type=jnp.float32)

    @pl.when(k == pl.num_programs(1) - 1)
    def _():
        o_ref[...] += b_dec_ref[...].astype(jnp.float32)


def _sae_kernel_scratch_acc(x_ref, w_enc_ref, b_enc_ref, thr_ref,
                            w_dec_ref, b_dec_ref, o_ref, acc_ref):
    """Non-f32-output path: accumulate in an f32 VMEM scratch, cast once at the end."""
    k = pl.program_id(1)

    @pl.when(k == 0)
    def _():
        acc_ref[...] = jnp.zeros_like(acc_ref)

    pre = jnp.dot(x_ref[...], w_enc_ref[...], preferred_element_type=jnp.float32)
    pre = pre + b_enc_ref[...].astype(jnp.float32)
    acts = jnp.where(pre > thr_ref[...].astype(jnp.float32),
                     jnp.maximum(pre, 0.0), 0.0)
    acc_ref[...] += jnp.dot(acts.astype(w_dec_ref.dtype), w_dec_ref[...],
                            preferred_element_type=jnp.float32)

    @pl.when(k == pl.num_programs(1) - 1)
    def _():
        o_ref[...] = (acc_ref[...] + b_dec_ref[...].astype(jnp.float32)
                      ).astype(o_ref.dtype)


@functools.partial(jax.jit, static_argnames=("block_n", "block_k"))
def jumprelu_sae_forward(x, w_enc, b_enc, threshold, w_dec, b_dec,
                         block_n=None, block_k=None):
    """x: [N, d_model] -> recon: [N, d_model] (JumpReLU SAE forward)."""
    n, d_model = x.shape
    d_sae = w_enc.shape[1]

    out_dtype = x.dtype                       # output keeps the activation dtype
    mm_dtype = w_enc.dtype                    # MXU operand dtype (bf16 weights -> bf16 path)
    x_item = jnp.dtype(mm_dtype).itemsize
    w_item = jnp.dtype(w_dec.dtype).itemsize
    out_item = jnp.dtype(out_dtype).itemsize
    use_scratch = jnp.dtype(out_dtype) != jnp.dtype(jnp.float32)

    vmem_limit, two_cores = _tpu_hw()
    dm_pad = _round_up(d_model, 128)
    tm, tk = _choose_tiles(n, dm_pad, d_sae, x_item, w_item, out_item,
                           use_scratch, vmem_limit, two_cores, block_n, block_k)

    n_pad = _round_up(n, tm)
    sae_pad = _round_up(d_sae, tk)

    # --- cast x to the matmul dtype once (no per-step cast inside the kernel)
    if x.dtype != mm_dtype:
        x = x.astype(mm_dtype)

    # --- zero-pad so every tile is full.  Padded SAE units are inert:
    #     pre = 0, threshold = 0, mask = (0 > 0) = False -> acts = 0.
    #     Padded N rows / d_model columns are sliced off at the end.
    if n_pad != n or dm_pad != d_model:
        x = jnp.pad(x, ((0, n_pad - n), (0, dm_pad - d_model)))
    if sae_pad != d_sae or dm_pad != d_model:
        w_enc = jnp.pad(w_enc, ((0, dm_pad - d_model), (0, sae_pad - d_sae)))
        w_dec = jnp.pad(w_dec, ((0, sae_pad - d_sae), (0, dm_pad - d_model)))
        b_enc = jnp.pad(b_enc, (0, sae_pad - d_sae))
        threshold = jnp.pad(threshold, (0, sae_pad - d_sae))
        b_dec = jnp.pad(b_dec, (0, dm_pad - d_model))

    # 1-D parameter vectors as [1, d] so they map onto (sublane, lane) tiles.
    b_enc2 = b_enc.reshape(1, sae_pad)
    thr2 = threshold.reshape(1, sae_pad)
    b_dec2 = b_dec.reshape(1, dm_pad)

    grid = (n_pad // tm, sae_pad // tk)

    if use_scratch:
        kernel = _sae_kernel_scratch_acc
        scratch_shapes = [pltpu.VMEM((tm, dm_pad), jnp.float32)]
    else:
        kernel = _sae_kernel_accumulate_out
        scratch_shapes = []

    # k-invariant blocks (x tile, b_dec) don't need a second pipeline buffer.
    x_spec = _block_spec((tm, dm_pad), lambda i, k: (i, 0), buffers=1)
    b_dec_spec = _block_spec((1, dm_pad), lambda i, k: (0, 0), buffers=1)

    # Advisory cost estimate so XLA schedules neighbors around this kernel.
    flops = 4 * n_pad * dm_pad * sae_pad                          # two matmuls
    bytes_accessed = (n_pad * dm_pad * (x_item + out_item)        # x in + recon out
                      + grid[0] * 2 * dm_pad * sae_pad * w_item   # streamed weights
                      + grid[0] * (2 * sae_pad + dm_pad) * 4)     # biases / threshold

    out = pl.pallas_call(
        kernel,
        out_shape=jax.ShapeDtypeStruct((n_pad, dm_pad), out_dtype),
        grid_spec=pltpu.PrefetchScalarGridSpec(
            num_scalar_prefetch=0,
            grid=grid,
            in_specs=[
                x_spec,                                            # x tile (k-invariant)
                pl.BlockSpec((dm_pad, tk), lambda i, k: (0, k)),   # W_enc[:, k]
                pl.BlockSpec((1, tk), lambda i, k: (0, k)),        # b_enc[k]
                pl.BlockSpec((1, tk), lambda i, k: (0, k)),        # threshold[k]
                pl.BlockSpec((tk, dm_pad), lambda i, k: (k, 0)),   # W_dec[k, :]
                b_dec_spec,                                        # b_dec (constant)
            ],
            out_specs=pl.BlockSpec((tm, dm_pad), lambda i, k: (i, 0)),
            scratch_shapes=scratch_shapes,
        ),
        compiler_params=pltpu.CompilerParams(
            dimension_semantics=("parallel", "arbitrary"),
            vmem_limit_bytes=int(vmem_limit),
        ),
        cost_estimate=pl.CostEstimate(
            flops=int(flops), transcendentals=0,
            bytes_accessed=int(bytes_accessed)),
    )(x, w_enc, b_enc2, thr2, w_dec, b_dec2)

    return out[:n, :d_model]


def _reference(x, w_enc, b_enc, threshold, w_dec, b_dec):
    pre = x @ w_enc + b_enc
    mask = pre > threshold
    acts = mask * jnp.maximum(pre, 0.0)
    return acts @ w_dec + b_dec


if __name__ == "__main__":
    # Small shapes consistent with the module: N tokens of width d_model,
    # SAE hidden width d_sae.
    N, D_MODEL, D_SAE = 8, 32, 64

    key = jax.random.PRNGKey(0)
    k_x, k_we, k_be, k_th, k_wd, k_bd = jax.random.split(key, 6)

    # Deterministic (non-zero) parameter init; the PyTorch __init__ uses
    # zeros, but random values exercise the JumpReLU gating meaningfully.
    x = jax.random.normal(k_x, (N, D_MODEL), dtype=jnp.float32)
    w_enc = jax.random.normal(k_we, (D_MODEL, D_SAE), dtype=jnp.float32) * 0.1
    b_enc = jax.random.normal(k_be, (D_SAE,), dtype=jnp.float32) * 0.1
    threshold = jax.random.normal(k_th, (D_SAE,), dtype=jnp.float32) * 0.05
    w_dec = jax.random.normal(k_wd, (D_SAE, D_MODEL), dtype=jnp.float32) * 0.1
    b_dec = jax.random.normal(k_bd, (D_MODEL,), dtype=jnp.float32) * 0.1

    ref = _reference(x, w_enc, b_enc, threshold, w_dec, b_dec)

    # --- f32 everything: accumulate-in-output path, tight check -------------
    out = jax.block_until_ready(
        jumprelu_sae_forward(x, w_enc, b_enc, threshold, w_dec, b_dec))
    assert out.shape == (N, D_MODEL)
    assert jnp.allclose(out, ref, atol=1e-5, rtol=1e-5), "f32 mismatch vs reference"

    # --- ragged N (exercises padding / tile-rounding) -----------------------
    out_r = jax.block_until_ready(
        jumprelu_sae_forward(x[:5], w_enc, b_enc, threshold, w_dec, b_dec))
    assert out_r.shape == (5, D_MODEL)
    assert jnp.allclose(out_r, ref[:5], atol=1e-5, rtol=1e-5), "ragged-N mismatch"

    # --- bf16 weights, f32 activations: bf16 MXU operands, f32 accumulate.
    # Note: acts are re-rounded to bf16 before the decode matmul (intended).
    out_bf = jax.block_until_ready(jumprelu_sae_forward(
        x, w_enc.astype(jnp.bfloat16), b_enc, threshold,
        w_dec.astype(jnp.bfloat16), b_dec))
    assert out_bf.shape == (N, D_MODEL)
    assert bool(jnp.all(jnp.isfinite(out_bf)))
    assert float(jnp.max(jnp.abs(out_bf.astype(jnp.float32) - ref))) < 0.1

    # --- bf16 end-to-end (bf16 output -> f32 scratch accumulator path) ------
    out_bb = jax.block_until_ready(jumprelu_sae_forward(
        x.astype(jnp.bfloat16), w_enc.astype(jnp.bfloat16), b_enc, threshold,
        w_dec.astype(jnp.bfloat16), b_dec))
    assert out_bb.shape == (N, D_MODEL)
    assert bool(jnp.all(jnp.isfinite(out_bb.astype(jnp.float32))))
    assert float(jnp.max(jnp.abs(out_bb.astype(jnp.float32) - ref))) < 0.2

    print("KERNEL_OK")
</pallas_src>

<mosaic_0001>
module attributes {stable_mosaic.version = 11 : i64} {
  func.func @_sae_kernel_accumulate_out(%arg0: i32, %arg1: i32, %arg2: memref<8x128xf32, #tpu.memory_space<vmem>>, %arg3: memref<128x128xf32, #tpu.memory_space<vmem>>, %arg4: memref<1x128xf32, #tpu.memory_space<vmem>>, %arg5: memref<1x128xf32, #tpu.memory_space<vmem>>, %arg6: memref<128x128xf32, #tpu.memory_space<vmem>>, %arg7: memref<1x128xf32, #tpu.memory_space<vmem>>, %arg8: memref<8x128xf32, #tpu.memory_space<vmem>>) attributes {dimension_semantics = [#tpu.dimension_semantics<parallel>, #tpu.dimension_semantics<arbitrary>], iteration_bounds = array<i64: 1, 1>, scalar_prefetch = 0 : i64, scratch_operands = 0 : i64, tpu.core_type = #tpu.core_type<tc>, window_params = [{pipeline_mode = #tpu.pipeline_mode<synchronous>, transform_indices = @transform_0, window_bounds = array<i64: 8, 128>}, {transform_indices = @transform_1, window_bounds = array<i64: 128, 128>}, {transform_indices = @transform_2, window_bounds = array<i64: 1, 128>}, {transform_indices = @transform_3, window_bounds = array<i64: 1, 128>}, {transform_indices = @transform_4, window_bounds = array<i64: 128, 128>}, {pipeline_mode = #tpu.pipeline_mode<synchronous>, transform_indices = @transform_5, window_bounds = array<i64: 1, 128>}, {transform_indices = @transform_6, window_bounds = array<i64: 8, 128>}]} {
    %c0_i32 = arith.constant 0 : i32
    %0 = arith.cmpi eq, %arg1, %c0_i32 : i32
    %1 = arith.extui %0 : i1 to i32
    %c0_i32_0 = arith.constant 0 : i32
    %2 = arith.cmpi ne, %1, %c0_i32_0 : i32
    scf.if %2 {
      %cst_19 = arith.constant 0.000000e+00 : f32
      %24 = vector.broadcast %cst_19 : f32 to vector<8x128xf32>
      %c0_20 = arith.constant 0 : index
      %c0_21 = arith.constant 0 : index
      %25 = vector.load %arg8[%c0_20, %c0_21] : memref<8x128xf32, #tpu.memory_space<vmem>>, vector<8x128xf32>
      tpu.vector_store %arg8[%c0_20, %c0_21], %24 {strides = array<i32>} : memref<8x128xf32, #tpu.memory_space<vmem>>, vector<8x128xf32>,
    } else {
    }
    %c0 = arith.constant 0 : index
    %c0_1 = arith.constant 0 : index
    %3 = vector.load %arg2[%c0, %c0_1] : memref<8x128xf32, #tpu.memory_space<vmem>>, vector<8x128xf32>
    %c0_2 = arith.constant 0 : index
    %c0_3 = arith.constant 0 : index
    %4 = vector.load %arg3[%c0_2, %c0_3] : memref<128x128xf32, #tpu.memory_space<vmem>>, vector<128x128xf32>
    %cst = arith.constant dense<0.000000e+00> : vector<8x128xf32>
    %5 = tpu.matmul %3, %4, %cst {dimension_numbers = #tpu.dot_dimension_numbers<[1], [0], [0], [1], [0, 0, 1, 1], [], []>} : vector<8x128xf32>, vector<128x128xf32>, vector<8x128xf32> -> vector<8x128xf32>
    %c0_4 = arith.constant 0 : index
    %c0_5 = arith.constant 0 : index
    %6 = vector.load %arg4[%c0_4, %c0_5] : memref<1x128xf32, #tpu.memory_space<vmem>>, vector<1x128xf32>
    %7 = vector.broadcast %6 : vector<1x128xf32> to vector<8x128xf32>
    %8 = arith.addf %5, %7 : vector<8x128xf32>
    %c0_6 = arith.constant 0 : index
    %c0_7 = arith.constant 0 : index
    %9 = vector.load %arg5[%c0_6, %c0_7] : memref<1x128xf32, #tpu.memory_space<vmem>>, vector<1x128xf32>
    %10 = vector.broadcast %9 : vector<1x128xf32> to vector<8x128xf32>
    %11 = arith.cmpf ogt, %8, %10 : vector<8x128xf32>
    %cst_8 = arith.constant 0.000000e+00 : f32
    %12 = vector.broadcast %cst_8 : f32 to vector<8x128xf32>
    %13 = arith.maximumf %8, %12 : vector<8x128xf32>
    %cst_9 = arith.constant 0.000000e+00 : f32
    %14 = vector.broadcast %cst_9 : f32 to vector<8x128xf32>
    %15 = arith.select %11, %13, %14 : vector<8x128xi1>, vector<8x128xf32>
    %c0_10 = arith.constant 0 : index
    %c0_11 = arith.constant 0 : index
    %16 = vector.load %arg8[%c0_10, %c0_11] : memref<8x128xf32, #tpu.memory_space<vmem>>, vector<8x128xf32>
    %c0_12 = arith.constant 0 : index
    %c0_13 = arith.constant 0 : index
    %17 = vector.load %arg6[%c0_12, %c0_13] : memref<128x128xf32, #tpu.memory_space<vmem>>, vector<128x128xf32>
    %cst_14 = arith.constant dense<0.000000e+00> : vector<8x128xf32>
    %18 = tpu.matmul %15, %17, %cst_14 {dimension_numbers = #tpu.dot_dimension_numbers<[1], [0], [0], [1], [0, 0, 1, 1], [], []>} : vector<8x128xf32>, vector<128x128xf32>, vector<8x128xf32> -> vector<8x128xf32>
    %19 = arith.addf %16, %18 : vector<8x128xf32>
    %c0_15 = arith.constant 0 : index
    %c0_16 = arith.constant 0 : index
    %20 = vector.load %arg8[%c0_15, %c0_16] : memref<8x128xf32, #tpu.memory_space<vmem>>, vector<8x128xf32>
    tpu.vector_store %arg8[%c0_15, %c0_16], %19 {strides = array<i32>} : memref<8x128xf32, #tpu.memory_space<vmem>>, vector<8x128xf32>,
    %c0_i32_17 = arith.constant 0 : i32
    %21 = arith.cmpi eq, %arg1, %c0_i32_17 : i32
    %22 = arith.extui %21 : i1 to i32
    %c0_i32_18 = arith.constant 0 : i32
    %23 = arith.cmpi ne, %22, %c0_i32_18 : i32
    scf.if %23 {
      %c0_19 = arith.constant 0 : index
      %c0_20 = arith.constant 0 : index
      %24 = vector.load %arg8[%c0_19, %c0_20] : memref<8x128xf32, #tpu.memory_space<vmem>>, vector<8x128xf32>
      %c0_21 = arith.constant 0 : index
      %c0_22 = arith.constant 0 : index
      %25 = vector.load %arg7[%c0_21, %c0_22] : memref<1x128xf32, #tpu.memory_space<vmem>>, vector<1x128xf32>
      %26 = vector.broadcast %25 : vector<1x128xf32> to vector<8x128xf32>
      %27 = arith.addf %24, %26 : vector<8x128xf32>
      %c0_23 = arith.constant 0 : index
      %c0_24 = arith.constant 0 : index
      %28 = vector.load %arg8[%c0_23, %c0_24] : memref<8x128xf32, #tpu.memory_space<vmem>>, vector<8x128xf32>
      tpu.vector_store %arg8[%c0_23, %c0_24], %27 {strides = array<i32>} : memref<8x128xf32, #tpu.memory_space<vmem>>, vector<8x128xf32>,
    } else {
    }
    return
  }
  func.func @transform_0(%arg0: i32, %arg1: i32) -> (i32, i32) {
    %c0_i32 = arith.constant 0 : i32
    %c0_i32_0 = arith.constant 0 : i32
    return %arg0, %c0_i32 : i32, i32
  }
  func.func @transform_1(%arg0: i32, %arg1: i32) -> (i32, i32) {
    %c0_i32 = arith.constant 0 : i32
    %c0_i32_0 = arith.constant 0 : i32
    return %c0_i32, %arg1 : i32, i32
  }
  func.func @transform_2(%arg0: i32, %arg1: i32) -> (i32, i32) {
    %c0_i32 = arith.constant 0 : i32
    %c0_i32_0 = arith.constant 0 : i32
    return %c0_i32, %arg1 : i32, i32
  }
  func.func @transform_3(%arg0: i32, %arg1: i32) -> (i32, i32) {
    %c0_i32 = arith.constant 0 : i32
    %c0_i32_0 = arith.constant 0 : i32
    return %c0_i32, %arg1 : i32, i32
  }
  func.func @transform_4(%arg0: i32, %arg1: i32) -> (i32, i32) {
    %c0_i32 = arith.constant 0 : i32
    %c0_i32_0 = arith.constant 0 : i32
    return %arg1, %c0_i32 : i32, i32
  }
  func.func @transform_5(%arg0: i32, %arg1: i32) -> (i32, i32) {
    %c0_i32 = arith.constant 0 : i32
    %c0_i32_0 = arith.constant 0 : i32
    %c0_i32_1 = arith.constant 0 : i32
    return %c0_i32, %c0_i32_0 : i32, i32
  }
  func.func @transform_6(%arg0: i32, %arg1: i32) -> (i32, i32) {
    %c0_i32 = arith.constant 0 : i32
    %c0_i32_0 = arith.constant 0 : i32
    return %arg0, %c0_i32 : i32, i32
  }
}

</mosaic_0001>

<llo_original>
// kernel: jumprelu_sae_forward.1
$region0: #{jumprelu_sae_forward.1}
  #allocation0 [shape = 'u32[]', space=smem, size = 0x4, offset = 0x4, fixed_abs, tag = 'smem constant byte address 0x4 - core index']
  #allocation1 [shape = 'u32[144,128]{1,0:T(1,128)}', space=vmem, size = 0x12000, scoped, tag = 'internal scratch']
  %s0 = inlined_call_operand.vmem [shape: f32[8,128], index: 0, kind: input, shape index: {}]
  %s1 = inlined_call_operand.vmem [shape: f32[128,128], index: 1, kind: input, shape index: {}]
  %s2 = inlined_call_operand.vmem [shape: f32[1,128], index: 2, kind: input, shape index: {}]
  %s3 = inlined_call_operand.vmem [shape: f32[1,128], index: 3, kind: input, shape index: {}]
  %s4 = inlined_call_operand.vmem [shape: f32[128,128], index: 4, kind: input, shape index: {}]
  %s5 = inlined_call_operand.vmem [shape: f32[1,128], index: 5, kind: input, shape index: {}]
  %s6 = inlined_call_operand.hbm [shape: f32[8,128], index: 6, kind: output, shape index: {}]
  %s7 = sld [smem:[#allocation0]]
  $region42: #{jumprelu_sae_forward.1} parent=0
    _
  %s9 = ssub.s32 1, %s7
  %s10 = scalar_select 0, %s9, %s7
  $region1: #{jumprelu_sae_forward.1} parent=0
    #allocation2 [shape = 'u8[4096]{0}', space=vmem, size = 0x1000, scoped, tag = 'output window, operand 0, single buffered']
    #allocation3 [shape = 's32[1]{0}', space=sflag, size = 0x4, scoped, tag = 'scoped memory for jumprelu_sae_forward.1']
    %11 = vsyncpa [#allocation3], 0
    // Predicated region
    $region2: #{jumprelu_sae_forward.1} parent=1 // pred_check
      _
    $region3: #{jumprelu_sae_forward.1} parent=1 // pred_check_branch
      %13 = sbr.rel (0) target = $region5
    $region4: #{jumprelu_sae_forward.1} parent=1 // pred_region
      _
    $region5: #{jumprelu_sae_forward.1} parent=1 // pred_fallthru
      _
    // Predicated region
    $region6: #{jumprelu_sae_forward.1} parent=1 // pred_check
      _
    $region7: #{jumprelu_sae_forward.1} parent=1 // pred_check_branch
      %15 = sbr.rel (0) target = $region9
    $region8: #{jumprelu_sae_forward.1} parent=1 // pred_region
      _
    $region9: #{jumprelu_sae_forward.1} parent=1 // pred_fallthru
      _
    // Predicated region
    $region10: #{jumprelu_sae_forward.1} parent=1 // pred_check
      _
    $region11: #{jumprelu_sae_forward.1} parent=1 // pred_check_branch
      %17 = sbr.rel (0) target = $region13
    $region12: #{jumprelu_sae_forward.1} parent=1 // pred_region
      _
    $region13: #{jumprelu_sae_forward.1} parent=1 // pred_fallthru
      _
    // Predicated region
    $region14: #{jumprelu_sae_forward.1} parent=1 // pred_check
      _
    $region15: #{jumprelu_sae_forward.1} parent=1 // pred_check_branch
      %19 = sbr.rel (0) target = $region17
    $region16: #{jumprelu_sae_forward.1} parent=1 // pred_region
      _
    $region17: #{jumprelu_sae_forward.1} parent=1 // pred_fallthru
      _
    // Predicated region
    $region18: #{jumprelu_sae_forward.1} parent=1 // pred_check
      _
    $region19: #{jumprelu_sae_forward.1} parent=1 // pred_check_branch
      %21 = sbr.rel (0) target = $region21
    $region20: #{jumprelu_sae_forward.1} parent=1 // pred_region
      _
    $region21: #{jumprelu_sae_forward.1} parent=1 // pred_fallthru
      _
    // Predicated region
    $region22: #{jumprelu_sae_forward.1} parent=1 // pred_check
      _
    $region23: #{jumprelu_sae_forward.1} parent=1 // pred_check_branch
      %23 = sbr.rel (0) target = $region25
    $region24: #{jumprelu_sae_forward.1} parent=1 // pred_region
      _
    $region25: #{jumprelu_sae_forward.1} parent=1 // pred_fallthru
      _
    %p24 = scmp.eq.s32.totalorder 0, 0
    // Predicated region
    $region26: #{jumprelu_sae_forward.1} parent=1 // pred_check
      %p25 = pneg %p24
    $region27: #{jumprelu_sae_forward.1} parent=1 // pred_check_branch
      %27 = sbr.rel (%p25) target = $region29
    $region28: #{jumprelu_sae_forward.1} parent=1 // pred_region
      %28 = vst [vmem:[#allocation2] sm:$0xff] 0.0
    $region29: #{jumprelu_sae_forward.1} parent=1 // pred_fallthru
      _
    %v29 = vld [vmem:[%s0] sm:$0xff]
    %v30 = vld [vmem:[%s1] sm:$0xff]
    %v31 = vld [vmem:[%s1 + $0x8] sm:$0xff]
    %v32 = vld [vmem:[%s1 + $0x10] sm:$0xff]
    %v33 = vld [vmem:[%s1 + $0x18] sm:$0xff]
    %v34 = vld [vmem:[%s1 + $0x20] sm:$0xff]
    %v35 = vld [vmem:[%s1 + $0x28] sm:$0xff]
    %v36 = vld [vmem:[%s1 + $0x30] sm:$0xff]
    %v37 = vld [vmem:[%s1 + $0x38] sm:$0xff]
    %v38 = vld [vmem:[%s1 + $0x40] sm:$0xff]
    %v39 = vld [vmem:[%s1 + $0x48] sm:$0xff]
    %v40 = vld [vmem:[%s1 + $0x50] sm:$0xff]
    %v41 = vld [vmem:[%s1 + $0x58] sm:$0xff]
    %v42 = vld [vmem:[%s1 + $0x60] sm:$0xff]
    %v43 = vld [vmem:[%s1 + $0x68] sm:$0xff]
    %v44 = vld [vmem:[%s1 + $0x70] sm:$0xff]
    %v45 = vld [vmem:[%s1 + $0x78] sm:$0xff]
    %v46 = vld [vmem:[%s2] sm:$0x1]
    %v48 = vlaneseq
    %v49 = vshrl.u32 %v48, 7
    %v50 = vsub.s32 0, %v49
    %v51 = vrot.slane %v46, %v50
    %53 = vmatprep.subr.mxu0 0.0
    %54 = vmatpush1.msra.mxu0 %v30
    %55 = vmatprep.subr.mxu0 0.0
    %56 = vmatpush1.msra.mxu0 %v31
    %57 = vmatprep.subr.mxu0 0.0
    %58 = vmatpush1.msra.mxu0 %v32
    %59 = vmatprep.subr.mxu0 0.0
    %60 = vmatpush1.msra.mxu0 %v33
    %61 = vmatprep.subr.mxu0 0.0
    %62 = vmatpush1.msra.mxu0 %v34
    %63 = vmatprep.subr.mxu0 0.0
    %64 = vmatpush1.msra.mxu0 %v35
    %65 = vmatprep.subr.mxu0 0.0
    %66 = vmatpush1.msra.mxu0 %v36
    %67 = vmatprep.subr.mxu0 0.0
    %68 = vmatpush1.msra.mxu0 %v37
    %69 = vmatprep.subr.mxu0 0.0
    %70 = vmatpush1.msra.mxu0 %v38
    %71 = vmatprep.subr.mxu0 0.0
    %72 = vmatpush1.msra.mxu0 %v39
    %73 = vmatprep.subr.mxu0 0.0
    %74 = vmatpush1.msra.mxu0 %v40
    %75 = vmatprep.subr.mxu0 0.0
    %76 = vmatpush1.msra.mxu0 %v41
    %77 = vmatprep.subr.mxu0 0.0
    %78 = vmatpush1.msra.mxu0 %v42
    %79 = vmatprep.subr.mxu0 0.0
    %80 = vmatpush1.msra.mxu0 %v43
    %81 = vmatprep.subr.mxu0 0.0
    %82 = vmatpush1.msra.mxu0 %v44
    %83 = vmatprep.subr.mxu0 0.0
    %84 = vmatpush1.msra.mxu0 %v45
    %85 = vmatprep.subr.mxu0 0.0
    %86 = vmatpush1.msra.mxu0 0.0
    %87 = vmatprep.subr.mxu0 0.0
    %88 = vmatpush1.msra.mxu0 0.0
    %89 = vmatprep.subr.mxu0 0.0
    %90 = vmatpush1.msra.mxu0 0.0
    %91 = vmatprep.subr.mxu0 0.0
    %92 = vmatpush1.msra.mxu0 0.0
    %93 = vmatprep.subr.mxu0 0.0
    %94 = vmatpush1.msra.mxu0 0.0
    %95 = vmatprep.subr.mxu0 0.0
    %96 = vmatpush1.msra.mxu0 0.0
    %97 = vmatprep.subr.mxu0 0.0
    %98 = vmatpush1.msra.mxu0 0.0
    %99 = vmatprep.subr.mxu0 0.0
    %100 = vmatpush1.msra.mxu0 0.0
    %101 = vmatprep.subr.mxu0 0.0
    %102 = vmatpush1.msra.mxu0 0.0
    %103 = vmatprep.subr.mxu0 0.0
    %104 = vmatpush1.msra.mxu0 0.0
    %105 = vmatprep.subr.mxu0 0.0
    %106 = vmatpush1.msra.mxu0 0.0
    %107 = vmatprep.subr.mxu0 0.0
    %108 = vmatpush1.msra.mxu0 0.0
    %109 = vmatprep.subr.mxu0 0.0
    %110 = vmatpush1.msra.mxu0 0.0
    %111 = vmatprep.subr.mxu0 0.0
    %112 = vmatpush1.msra.mxu0 0.0
    %113 = vmatprep.subr.mxu0 0.0
    %114 = vmatpush1.msra.mxu0 0.0
    %115 = vmatprep.subr.mxu0 0.0
    %116 = vmatpush1.msra.mxu0 0.0
    %117 = vmatprep.mubr.f32.mxu0 0.0
    %118 = vmatmul.mubr.f32.gmra.mrb[0].mxu0 %v29
    %v119 = vpop.f32.mrb[0].mxu0
    %v120 = vadd.f32 %v51, %v119
    %v121 = vpop.f32.mrb[0].mxu0
    %122 = vdwg.mxu0
    %v123 = vld [vmem:[%s3] sm:$0x1]
    %v125 = vlaneseq
    %v126 = vshrl.u32 %v125, 7
    %v127 = vsub.s32 0, %v126
    %v128 = vrot.slane %v123, %v127
    %vm130 = vcmp.gt.f32.partialorder %v120, %v128
    %v131 = vmax.f32 %v120, 0.0
    %v132 = vsel %vm130, %v131, 0.0
    %v133 = vld [vmem:[#allocation2] sm:$0xff]
    %v134 = vld [vmem:[%s4] sm:$0xff]
    %v135 = vld [vmem:[%s4 + $0x8] sm:$0xff]
    %v136 = vld [vmem:[%s4 + $0x10] sm:$0xff]
    %v137 = vld [vmem:[%s4 + $0x18] sm:$0xff]
    %v138 = vld [vmem:[%s4 + $0x20] sm:$0xff]
    %v139 = vld [vmem:[%s4 + $0x28] sm:$0xff]
    %v140 = vld [vmem:[%s4 + $0x30] sm:$0xff]
    %v141 = vld [vmem:[%s4 + $0x38] sm:$0xff]
    %v142 = vld [vmem:[%s4 + $0x40] sm:$0xff]
    %v143 = vld [vmem:[%s4 + $0x48] sm:$0xff]
    %v144 = vld [vmem:[%s4 + $0x50] sm:$0xff]
    %v145 = vld [vmem:[%s4 + $0x58] sm:$0xff]
    %v146 = vld [vmem:[%s4 + $0x60] sm:$0xff]
    %v147 = vld [vmem:[%s4 + $0x68] sm:$0xff]
    %v148 = vld [vmem:[%s4 + $0x70] sm:$0xff]
    %v149 = vld [vmem:[%s4 + $0x78] sm:$0xff]
    %150 = vmatprep.subr.mxu0 0.0
    %151 = vmatpush1.msra.mxu0 %v134
    %152 = vmatprep.subr.mxu0 0.0
    %153 = vmatpush1.msra.mxu0 %v135
    %154 = vmatprep.subr.mxu0 0.0
    %155 = vmatpush1.msra.mxu0 %v136
    %156 = vmatprep.subr.mxu0 0.0
    %157 = vmatpush1.msra.mxu0 %v137
    %158 = vmatprep.subr.mxu0 0.0
    %159 = vmatpush1.msra.mxu0 %v138
    %160 = vmatprep.subr.mxu0 0.0
    %161 = vmatpush1.msra.mxu0 %v139
    %162 = vmatprep.subr.mxu0 0.0
    %163 = vmatpush1.msra.mxu0 %v140
    %164 = vmatprep.subr.mxu0 0.0
    %165 = vmatpush1.msra.mxu0 %v141
    %166 = vmatprep.subr.mxu0 0.0
    %167 = vmatpush1.msra.mxu0 %v142
    %168 = vmatprep.subr.mxu0 0.0
    %169 = vmatpush1.msra.mxu0 %v143
    %170 = vmatprep.subr.mxu0 0.0
    %171 = vmatpush1.msra.mxu0 %v144
    %172 = vmatprep.subr.mxu0 0.0
    %173 = vmatpush1.msra.mxu0 %v145
    %174 = vmatprep.subr.mxu0 0.0
    %175 = vmatpush1.msra.mxu0 %v146
    %176 = vmatprep.subr.mxu0 0.0
    %177 = vmatpush1.msra.mxu0 %v147
    %178 = vmatprep.subr.mxu0 0.0
    %179 = vmatpush1.msra.mxu0 %v148
    %180 = vmatprep.subr.mxu0 0.0
    %181 = vmatpush1.msra.mxu0 %v149
    %182 = vmatprep.subr.mxu0 0.0
    %183 = vmatpush1.msra.mxu0 0.0
    %184 = vmatprep.subr.mxu0 0.0
    %185 = vmatpush1.msra.mxu0 0.0
    %186 = vmatprep.subr.mxu0 0.0
    %187 = vmatpush1.msra.mxu0 0.0
    %188 = vmatprep.subr.mxu0 0.0
    %189 = vmatpush1.msra.mxu0 0.0
    %190 = vmatprep.subr.mxu0 0.0
    %191 = vmatpush1.msra.mxu0 0.0
    %192 = vmatprep.subr.mxu0 0.0
    %193 = vmatpush1.msra.mxu0 0.0
    %194 = vmatprep.subr.mxu0 0.0
    %195 = vmatpush1.msra.mxu0 0.0
    %196 = vmatprep.subr.mxu0 0.0
    %197 = vmatpush1.msra.mxu0 0.0
    %198 = vmatprep.subr.mxu0 0.0
    %199 = vmatpush1.msra.mxu0 0.0
    %200 = vmatprep.subr.mxu0 0.0
    %201 = vmatpush1.msra.mxu0 0.0
    %202 = vmatprep.subr.mxu0 0.0
    %203 = vmatpush1.msra.mxu0 0.0
    %204 = vmatprep.subr.mxu0 0.0
    %205 = vmatpush1.msra.mxu0 0.0
    %206 = vmatprep.subr.mxu0 0.0
    %207 = vmatpush1.msra.mxu0 0.0
    %208 = vmatprep.subr.mxu0 0.0
    %209 = vmatpush1.msra.mxu0 0.0
    %210 = vmatprep.subr.mxu0 0.0
    %211 = vmatpush1.msra.mxu0 0.0
    %212 = vmatprep.subr.mxu0 0.0
    %213 = vmatpush1.msra.mxu0 0.0
    %214 = vmatprep.mubr.f32.mxu0 0.0
    %215 = vmatmul.mubr.f32.gmra.mrb[0].mxu0 %v132
    %v216 = vpop.f32.mrb[0].mxu0
    %v217 = vadd.f32 0.0, %v216
    %v218 = vpop.f32.mrb[0].mxu0
    %219 = vdwg.mxu0
    %v220 = vadd.f32 %v133, %v217
    %221 = vst [vmem:[#allocation2] sm:$0xff] %v220
    // Predicated region
    $region30: #{jumprelu_sae_forward.1} parent=1 // pred_check
      %p222 = pneg %p24
    $region31: #{jumprelu_sae_forward.1} parent=1 // pred_check_branch
      %224 = sbr.rel (%p222) target = $region33
    $region32: #{jumprelu_sae_forward.1} parent=1 // pred_region
      %v225 = vld [vmem:[#allocation2] sm:$0xff]
      %v226 = vld [vmem:[%s5] sm:$0x1]
      %v228 = vlaneseq
      %v229 = vshrl.u32 %v228, 7
      %v230 = vsub.s32 0, %v229
      %v231 = vrot.slane %v226, %v230
      %v233 = vadd.f32 %v225, %v231
      %234 = vst [vmem:[#allocation2] sm:$0xff] %v233
    $region33: #{jumprelu_sae_forward.1} parent=1 // pred_fallthru
      _
    // Predicated region
    $region34: #{jumprelu_sae_forward.1} parent=1 // pred_check
      _
    $region35: #{jumprelu_sae_forward.1} parent=1 // pred_check_branch
      %236 = sbr.rel (0) target = $region37
    $region36: #{jumprelu_sae_forward.1} parent=1 // pred_region
      %s238 = ssub.s32 128, 128
      %239 = vsyncadd [#allocation3], %s238
      %s241 = sshll.u32 [#allocation2], 4
      %s242 = int_to_ptr.vmem [resolvable:$true] %s241
      %244 = dma.vmem_to_hbm [thread:$0]  %s242, 128, %s6, [#allocation3]
    $region37: #{jumprelu_sae_forward.1} parent=1 // pred_fallthru
      _
    // Predicated region
    $region38: #{jumprelu_sae_forward.1} parent=1 // pred_check
      _
    $region39: #{jumprelu_sae_forward.1} parent=1 // pred_check_branch
      %246 = sbr.rel (0) target = $region41
    $region40: #{jumprelu_sae_forward.1} parent=1 // pred_region
      %247 = dma.done [#allocation3], 128
    $region41: #{jumprelu_sae_forward.1} parent=1 // pred_fallthru
      _
    %248 = vsyncpa [#allocation3], 1

</llo_original>
